<compile_context>
chip_gen: v6e
topology: v6e:2x2x1
jax: 0.10.0
libtpu: 0.0.40
codegen_flags: <defaults>
</compile_context>

<pallas_src>
import functools

import jax
import jax.numpy as jnp
from jax.experimental import pallas as pl
from jax.experimental.pallas import tpu as pltpu


# ---------------------------------------------------------------------------
# Small helpers
# ---------------------------------------------------------------------------
def _cdiv(a, b):
    return -(-a // b)


def _round_up(x, m):
    return ((x + m - 1) // m) * m


def _padded_rows(rows, itemsize):
    """Sublane-padded row count of a (rows, lanes) VMEM block for this dtype."""
    pack = max(1, 4 // int(itemsize))          # f32 -> 1, bf16 -> 2, int8 -> 4
    return _round_up(rows, 8 * pack)


def _physical_vmem_bytes():
    try:
        return int(pltpu.get_tpu_info().vmem_capacity_bytes)
    except Exception:
        return 64 * 1024 * 1024                # conservative: v7x per-TensorCore


# ---------------------------------------------------------------------------
# Kernels
# ---------------------------------------------------------------------------
def _sse_kernel(x_ref, t_ref, o_ref, acc_ref, *, hw_total, tile_hw, needs_mask):
    """Unweighted partial SSE for one (hw-tile h, batch b) grid step.

    x_ref  : (1, C, T) sample b, hw-tile h (native dtype)
    t_ref  : (1, C, T) target hw-tile h (block index constant along inner b
             axis, so it stays resident in VMEM while b advances)
    o_ref  : (1, 1, 1) per-hw-tile partial SSE (stored once, at the last b)
    acc_ref: (1, 1) f32 VMEM scratch accumulator
    """
    b = pl.program_id(1)

    @pl.when(b == 0)
    def _():
        acc_ref[...] = jnp.zeros_like(acc_ref)

    x = x_ref[0].astype(jnp.float32)
    t = t_ref[0].astype(jnp.float32)
    d = x - t
    d2 = d * d
    if needs_mask:
        h = pl.program_id(0)
        lane = jax.lax.broadcasted_iota(jnp.int32, d2.shape, d2.ndim - 1)
        d2 = jnp.where(lane < hw_total - h * tile_hw, d2, 0.0)
    acc_ref[...] += jnp.sum(d2)

    @pl.when(b == pl.num_programs(1) - 1)
    def _():
        o_ref[0] = acc_ref[...]


def _sse_kernel_weighted(x_ref, w_ref, t_ref, o_ref, acc_ref, *,
                         hw_total, tile_hw, needs_mask):
    """Weighted variant: diff = x * w - t; w broadcasts over channels if (1,1,H,W)."""
    b = pl.program_id(1)

    @pl.when(b == 0)
    def _():
        acc_ref[...] = jnp.zeros_like(acc_ref)

    x = x_ref[0].astype(jnp.float32)
    w = w_ref[0].astype(jnp.float32)           # (1, T) or (C, T)
    t = t_ref[0].astype(jnp.float32)
    d = x * w - t
    d2 = d * d
    if needs_mask:
        h = pl.program_id(0)
        lane = jax.lax.broadcasted_iota(jnp.int32, d2.shape, d2.ndim - 1)
        d2 = jnp.where(lane < hw_total - h * tile_hw, d2, 0.0)
    acc_ref[...] += jnp.sum(d2)

    @pl.when(b == pl.num_programs(1) - 1)
    def _():
        o_ref[0] = acc_ref[...]


# ---------------------------------------------------------------------------
# Wrapper
# ---------------------------------------------------------------------------
def content_loss_pallas(x_nchw, target_nchw, strength, weights_nchw=None):
    """sum_idx MSE(x[[idx]] * w, target) * strength / B   ->  scalar f32."""
    B, C, H, W = x_nchw.shape
    HW = H * W

    # Native dtypes straight into the kernel; the kernel casts to f32.
    x = x_nchw.reshape(B, C, HW)
    t = target_nchw.reshape(1, C, HW)

    has_w = weights_nchw is not None
    if has_w:
        wsize = weights_nchw.size
        if wsize == HW:
            wc = 1                              # spatial mask: broadcast over C
        elif wsize == C * HW:
            wc = C
        else:
            raise ValueError("weights must broadcast against a (1,C,H,W) sample")
        w = weights_nchw.reshape(1, wc, HW)

    # ---- generation-aware VMEM / tile planning ------------------------------
    x_item = jnp.dtype(x.dtype).itemsize
    t_item = jnp.dtype(t.dtype).itemsize
    per_lane = (2 * _padded_rows(C, x_item) * x_item        # x, double-buffered
                + 2 * _padded_rows(C, t_item) * t_item)     # target
    if has_w:
        w_item = jnp.dtype(w.dtype).itemsize
        per_lane += 2 * _padded_rows(wc, w_item) * w_item   # weights

    phys_vmem = _physical_vmem_bytes()
    vmem_limit = min(phys_vmem * 3 // 4, 100 * 1024 * 1024)  # 96 MiB v5e/v6e, 48 MiB v7x
    stream_budget = max(vmem_limit - (6 << 20), 4 << 20)     # headroom for scratch/internal

    if HW <= 128:
        tile_hw = HW                            # single full-extent block
    else:
        budget_tile = max(128, (stream_budget // per_lane) // 128 * 128)
        # Keep >= 2 hw tiles so the "parallel" axis feeds both v7x TensorCores.
        half = _round_up(_cdiv(HW, 2), 128)
        tile_hw = min(budget_tile, half)
    n_hw = _cdiv(HW, tile_hw)
    needs_mask = (HW % tile_hw) != 0

    x_spec = pl.BlockSpec((1, C, tile_hw), lambda h, b: (b, 0, h))
    t_spec = pl.BlockSpec((1, C, tile_hw), lambda h, b: (0, 0, h))  # const in b
    out_spec = pl.BlockSpec((1, 1, 1), lambda h, b: (h, 0, 0))      # const in b

    if has_w:
        w_spec = pl.BlockSpec((1, wc, tile_hw), lambda h, b: (0, 0, h))
        kernel = functools.partial(_sse_kernel_weighted, hw_total=HW,
                                   tile_hw=tile_hw, needs_mask=needs_mask)
        in_specs = [x_spec, w_spec, t_spec]
        operands = (x, w, t)
        flops = 4 * B * C * HW
        bytes_in = x.size * x_item + t.size * t_item + w.size * w_item
    else:
        kernel = functools.partial(_sse_kernel, hw_total=HW,
                                   tile_hw=tile_hw, needs_mask=needs_mask)
        in_specs = [x_spec, t_spec]
        operands = (x, t)
        flops = 3 * B * C * HW
        bytes_in = x.size * x_item + t.size * t_item

    partial_sse = pl.pallas_call(
        kernel,
        out_shape=jax.ShapeDtypeStruct((n_hw, 1, 1), jnp.float32),
        grid_spec=pltpu.PrefetchScalarGridSpec(
            num_scalar_prefetch=0,
            grid=(n_hw, B),                     # hw tiles outer (parallel), batch inner
            in_specs=in_specs,
            out_specs=out_spec,
            scratch_shapes=[pltpu.VMEM((1, 1), jnp.float32)],
        ),
        compiler_params=pltpu.CompilerParams(
            dimension_semantics=("parallel", "arbitrary"),
            vmem_limit_bytes=int(vmem_limit),
        ),
        cost_estimate=pl.CostEstimate(
            flops=int(flops),
            transcendentals=0,
            bytes_accessed=int(bytes_in + n_hw * 4),
        ),
    )(*operands)

    # Tiny final reduction + MSE/strength scaling in the surrounding XLA graph.
    return (jnp.sum(partial_sse) * (float(strength) / float(B * C * HW))).astype(jnp.float32)


# ---------------------------------------------------------------------------
# Functional mirror of the PyTorch module (forward only)
# ---------------------------------------------------------------------------
class ContentLoss:
    def __init__(self, strength, normalize=False):
        self.strength = strength
        self.normalize = normalize
        self.mode = "none"
        self.weights = None
        self.loss = jnp.float32(0.0)
        self.target = None
        self.name = "content"

    def forward(self, x):
        if self.mode == "none" or (
            self.target is not None
            and self.target.size != 0
            and x.shape[1:] != self.target.shape[1:]
        ):
            return x
        if "temporal" in self.name and self.target is not None \
                and self.target.shape[0] == 0 and self.mode == "loss":
            return x
        if self.mode == "loss":
            # ScaleGradients.apply is forward-identity, so normalize does not
            # change the forward value of the loss.
            self.loss = content_loss_pallas(
                x, self.target, self.strength, self.weights)
        if self.mode == "capture":
            self.target = jax.lax.stop_gradient(x)
        return x


# ---------------------------------------------------------------------------
# Self-test
# ---------------------------------------------------------------------------
if __name__ == "__main__":
    key = jax.random.PRNGKey(0)
    k1, k2, k3, k4, k5, k6 = jax.random.split(key, 6)

    # --- unweighted path (HW=256 -> two 128-wide tiles, no tail mask) -------
    B, C, H, W = 2, 4, 16, 16
    x = jax.random.normal(k1, (B, C, H, W), dtype=jnp.float32)
    capture_frame = jax.random.normal(k2, (1, C, H, W), dtype=jnp.float32)
    spatial_w = jax.random.uniform(k3, (1, 1, H, W), dtype=jnp.float32)

    cl = ContentLoss(strength=5.0, normalize=False)
    cl.mode = "capture"
    cl.forward(capture_frame)
    cl.mode = "loss"
    out = cl.forward(x)
    loss = jax.block_until_ready(cl.loss)
    out = jax.block_until_ready(out)

    ref = jnp.float32(0.0)
    for idx in range(B):
        ref = ref + jnp.mean((x[idx:idx + 1] - capture_frame) ** 2) * cl.strength / B
    assert out.shape == x.shape and jnp.allclose(out, x)
    assert jnp.allclose(loss, ref, rtol=1e-5, atol=1e-6), (loss, ref)

    # --- spatial-mask weights path ------------------------------------------
    cl2 = ContentLoss(strength=2.5, normalize=True)
    cl2.weights = spatial_w
    cl2.mode = "capture"
    cl2.forward(capture_frame)
    cl2.mode = "loss"
    cl2.forward(x)
    loss2 = jax.block_until_ready(cl2.loss)

    ref2 = jnp.float32(0.0)
    for idx in range(B):
        ref2 = ref2 + jnp.mean(
            (x[idx:idx + 1] * spatial_w - capture_frame) ** 2) * cl2.strength / B
    assert jnp.allclose(loss2, ref2, rtol=1e-5, atol=1e-6), (loss2, ref2)

    # --- bf16 activations fed in native dtype (cast happens in-kernel) ------
    xb = x.astype(jnp.bfloat16)
    tb = capture_frame.astype(jnp.bfloat16)
    cl3 = ContentLoss(strength=3.0)
    cl3.mode = "capture"
    cl3.forward(tb)
    cl3.mode = "loss"
    cl3.forward(xb)
    loss3 = jax.block_until_ready(cl3.loss)

    xb32 = xb.astype(jnp.float32)
    tb32 = tb.astype(jnp.float32)
    ref3 = jnp.float32(0.0)
    for idx in range(B):
        ref3 = ref3 + jnp.mean((xb32[idx:idx + 1] - tb32) ** 2) * cl3.strength / B
    assert jnp.allclose(loss3, ref3, rtol=1e-5, atol=1e-6), (loss3, ref3)

    # --- non-divisible HW -> masked tail tile; C=3 exercises sublane pad ----
    B2, C2, H2, W2 = 2, 3, 20, 20              # HW=400 -> tiles (256, 144-masked)
    x4 = jax.random.normal(k4, (B2, C2, H2, W2), dtype=jnp.float32)
    t4 = jax.random.normal(k5, (1, C2, H2, W2), dtype=jnp.float32)
    cl4 = ContentLoss(strength=1.5)
    cl4.mode = "capture"
    cl4.forward(t4)
    cl4.mode = "loss"
    cl4.forward(x4)
    loss4 = jax.block_until_ready(cl4.loss)

    ref4 = jnp.float32(0.0)
    for idx in range(B2):
        ref4 = ref4 + jnp.mean((x4[idx:idx + 1] - t4) ** 2) * cl4.strength / B2
    assert jnp.allclose(loss4, ref4, rtol=1e-5, atol=1e-6), (loss4, ref4)

    # --- masked tail + spatial weights together ------------------------------
    w5 = jax.random.uniform(k6, (1, 1, H2, W2), dtype=jnp.float32)
    cl5 = ContentLoss(strength=0.75)
    cl5.weights = w5
    cl5.mode = "capture"
    cl5.forward(t4)
    cl5.mode = "loss"
    cl5.forward(x4)
    loss5 = jax.block_until_ready(cl5.loss)

    ref5 = jnp.float32(0.0)
    for idx in range(B2):
        ref5 = ref5 + jnp.mean((x4[idx:idx + 1] * w5 - t4) ** 2) * cl5.strength / B2
    assert jnp.allclose(loss5, ref5, rtol=1e-5, atol=1e-6), (loss5, ref5)

    print("KERNEL_OK")
</pallas_src>

<mosaic_0001>
module attributes {stable_mosaic.version = 11 : i64} {
  func.func @_sse_kernel(%arg0: i32, %arg1: i32, %arg2: memref<1x4x128xf32, #tpu.memory_space<vmem>>, %arg3: memref<1x4x128xf32, #tpu.memory_space<vmem>>, %arg4: memref<1x1x1xf32, #tpu.memory_space<vmem>>, %arg5: memref<1x1xf32, #tpu.memory_space<vmem>>) attributes {dimension_semantics = [#tpu.dimension_semantics<parallel>, #tpu.dimension_semantics<arbitrary>], iteration_bounds = array<i64: 2, 2>, scalar_prefetch = 0 : i64, scratch_operands = 1 : i64, tpu.core_type = #tpu.core_type<tc>, window_params = [{transform_indices = @transform_0, window_bounds = array<i64: 1, 4, 128>}, {transform_indices = @transform_1, window_bounds = array<i64: 1, 4, 128>}, {transform_indices = @transform_2, window_bounds = array<i64: 1, 1, 1>}]} {
    %c0_i32 = arith.constant 0 : i32
    %0 = arith.cmpi eq, %arg1, %c0_i32 : i32
    %1 = arith.extui %0 : i1 to i32
    %c0_i32_0 = arith.constant 0 : i32
    %2 = arith.cmpi ne, %1, %c0_i32_0 : i32
    scf.if %2 {
      %cst_11 = arith.constant 0.000000e+00 : f32
      %20 = vector.broadcast %cst_11 : f32 to vector<1x1xf32>
      %c0_12 = arith.constant 0 : index
      %c0_13 = arith.constant 0 : index
      %21 = vector.load %arg5[%c0_12, %c0_13] : memref<1x1xf32, #tpu.memory_space<vmem>>, vector<1x1xf32>
      tpu.vector_store %arg5[%c0_12, %c0_13], %20 {strides = array<i32>} : memref<1x1xf32, #tpu.memory_space<vmem>>, vector<1x1xf32>,
    } else {
    }
    %c0 = arith.constant 0 : index
    %c0_1 = arith.constant 0 : index
    %c0_2 = arith.constant 0 : index
    %3 = vector.load %arg2[%c0, %c0_1, %c0_2] : memref<1x4x128xf32, #tpu.memory_space<vmem>>, vector<1x4x128xf32>
    %4 = vector.shape_cast %3 : vector<1x4x128xf32> to vector<4x128xf32>
    %c0_3 = arith.constant 0 : index
    %c0_4 = arith.constant 0 : index
    %c0_5 = arith.constant 0 : index
    %5 = vector.load %arg3[%c0_3, %c0_4, %c0_5] : memref<1x4x128xf32, #tpu.memory_space<vmem>>, vector<1x4x128xf32>
    %6 = vector.shape_cast %5 : vector<1x4x128xf32> to vector<4x128xf32>
    %7 = arith.subf %4, %6 : vector<4x128xf32>
    %8 = arith.mulf %7, %7 : vector<4x128xf32>
    %c0_6 = arith.constant 0 : index
    %c0_7 = arith.constant 0 : index
    %9 = vector.load %arg5[%c0_6, %c0_7] : memref<1x1xf32, #tpu.memory_space<vmem>>, vector<1x1xf32>
    %10 = vector.shape_cast %8 : vector<4x128xf32> to vector<1x4x128xf32>
    %cst = arith.constant dense<0.000000e+00> : vector<1xf32>
    %11 = vector.multi_reduction <add>, %10, %cst [1, 2] : vector<1x4x128xf32> to vector<1xf32>
    %12 = vector.shape_cast %11 : vector<1xf32> to vector<1x1x1xf32>
    %13 = vector.extract %12[0, 0, 0] : f32 from vector<1x1x1xf32>
    %14 = vector.broadcast %13 : f32 to vector<1x1xf32>
    %15 = arith.addf %9, %14 : vector<1x1xf32>
    %c0_8 = arith.constant 0 : index
    %c0_9 = arith.constant 0 : index
    %16 = vector.load %arg5[%c0_8, %c0_9] : memref<1x1xf32, #tpu.memory_space<vmem>>, vector<1x1xf32>
    tpu.vector_store %arg5[%c0_8, %c0_9], %15 {strides = array<i32>} : memref<1x1xf32, #tpu.memory_space<vmem>>, vector<1x1xf32>,
    %c1_i32 = arith.constant 1 : i32
    %17 = arith.cmpi eq, %arg1, %c1_i32 : i32
    %18 = arith.extui %17 : i1 to i32
    %c0_i32_10 = arith.constant 0 : i32
    %19 = arith.cmpi ne, %18, %c0_i32_10 : i32
    scf.if %19 {
      %c0_11 = arith.constant 0 : index
      %c0_12 = arith.constant 0 : index
      %20 = vector.load %arg5[%c0_11, %c0_12] : memref<1x1xf32, #tpu.memory_space<vmem>>, vector<1x1xf32>
      %c0_13 = arith.constant 0 : index
      %c0_14 = arith.constant 0 : index
      %c0_15 = arith.constant 0 : index
      %21 = vector.load %arg4[%c0_13, %c0_14, %c0_15] : memref<1x1x1xf32, #tpu.memory_space<vmem>>, vector<1x1x1xf32>
      %22 = vector.shape_cast %21 : vector<1x1x1xf32> to vector<1x1xf32>
      %23 = vector.shape_cast %20 : vector<1x1xf32> to vector<1x1x1xf32>
      tpu.vector_store %arg4[%c0_13, %c0_14, %c0_15], %23 {strides = array<i32>} : memref<1x1x1xf32, #tpu.memory_space<vmem>>, vector<1x1x1xf32>,
    } else {
    }
    return
  }
  func.func @transform_0(%arg0: i32, %arg1: i32) -> (i32, i32, i32) {
    %c0_i32 = arith.constant 0 : i32
    %c0_i32_0 = arith.constant 0 : i32
    return %arg1, %c0_i32, %arg0 : i32, i32, i32
  }
  func.func @transform_1(%arg0: i32, %arg1: i32) -> (i32, i32, i32) {
    %c0_i32 = arith.constant 0 : i32
    %c0_i32_0 = arith.constant 0 : i32
    %c0_i32_1 = arith.constant 0 : i32
    return %c0_i32, %c0_i32_0, %arg0 : i32, i32, i32
  }
  func.func @transform_2(%arg0: i32, %arg1: i32) -> (i32, i32, i32) {
    %c0_i32 = arith.constant 0 : i32
    %c0_i32_0 = arith.constant 0 : i32
    %c0_i32_1 = arith.constant 0 : i32
    return %arg0, %c0_i32, %c0_i32_0 : i32, i32, i32
  }
}

</mosaic_0001>

<llo_original>
// kernel: tpu_custom_call.1
$region0: #{tpu_custom_call.1}
  #allocation0 [shape = 'u32[]', space=smem, size = 0x4, offset = 0x4, fixed_abs, tag = 'smem constant byte address 0x4 - core index']
  #allocation1 [shape = 'u32[144,128]{1,0:T(1,128)}', space=vmem, size = 0x12000, scoped, tag = 'internal scratch']
  #allocation2 [shape = 'f32[1,1]{1,0:T(1,128)}', space=vmem, size = 0x200, scoped, tag = 'scratch operand']
  %s0 = inlined_call_operand.hbm [shape: f32[2,4,256], index: 0, kind: input, shape index: {}]
  %s1 = inlined_call_operand.hbm [shape: f32[1,4,256], index: 1, kind: input, shape index: {}]
  %s2 = inlined_call_operand.vmem [shape: f32[2,1,1], index: 2, kind: output, shape index: {}]
  %s3 = sld [smem:[#allocation0]]
  $region57: #{tpu_custom_call.1} parent=0
    _
  %s5 = ssub.s32 1, %s3
  %s6 = scalar_select 0, %s5, %s3
  $region1: #{tpu_custom_call.1} parent=0
    #allocation3 [shape = 'u8[4096]{0}', space=vmem, size = 0x1000, scoped, tag = 'input window, operand 0']
    #allocation4 [shape = 's32[2]{0}', space=sflag, size = 0x8, scoped, tag = 'scoped memory for tpu_custom_call.1']
    #allocation5 [shape = 'u8[4096]{0}', space=vmem, size = 0x1000, scoped, tag = 'input window, operand 1']
    #allocation6 [shape = 's32[2]{0}', space=sflag, size = 0x8, scoped, tag = 'scoped memory for tpu_custom_call.1']
    %7 = vsyncpa [#allocation4], 0
    %s8 = scalar_lea.sflag [#allocation4], 1
    %9 = vsyncpa %s8, 0
    %10 = vsyncpa [#allocation6], 0
    %s11 = scalar_lea.sflag [#allocation6], 1
    %12 = vsyncpa %s11, 0
    loop: start=0, step=1, limit=6
    $region2: #{tpu_custom_call.1} parent=1 // loop_pre_header
      _
    $region3: #{tpu_custom_call.1} parent=1 // loop_header
      %s14 = sphi 0, %s18
      %p15 = scmp.ge.s32.totalorder %s14, 6
      %s21 = sphi 0, %s33
      %s22 = sphi 0, %s29
      %s23 = sphi 0, %s21
      %s24 = sphi 0, %s22
      %s25 = sphi 0, %s23
      %s26 = sphi 0, %s24
      %s38 = sphi 0, %s40
      %s41 = sphi 0, %s38
      %s42 = sphi 0, %s41
      %s58 = sphi 0, %s42
      %s64 = sphi 0, %s66
      %s67 = sphi 0, %s64
      %s68 = sphi 0, %s67
      %s84 = sphi 0, %s68
      %s90 = sphi 0, %s92
      %s93 = sphi 0, %s90
      %s94 = sphi 0, %s93
      %s110 = sphi 0, %s94
    $region4: #{tpu_custom_call.1} parent=1 // loop_header_branch
      %17 = sbr.rel (%p15) target = $region8
    $region5: #{tpu_custom_call.1} parent=1 // loop_body
      %s19 = ssub.s32 %s14, 1
      %s20 = ssub.s32 %s14, 2
      %s27 = sadd.s32 1, %s22
      %p28 = scmp.ge.s32.totalorder %s27, 2
      %s29 = scalar_select %p28, 0, %s27
      %s30 = sadd.s32 1, %s21
      %s31 = scalar_select %p28, %s30, %s21
      %p32 = scmp.ge.s32.totalorder %s31, 2
      %s33 = scalar_select %p32, 0, %s31
      %s34 = ssub.s32 %s22, %s29
      %s35 = ssub.s32 %s21, %s33
      %s36 = sor.u32 %s34, %s35
      %p37 = scmp.eq.s32.totalorder %s36, 0
      %s39 = sadd.s32 %s38, 1
      %s40 = scalar_select %p37, %s38, %s39
      %p43 = pneg %p37
      %p44 = scmp.eq.s32.totalorder %s14, 3
      %p45 = por %p43, %p44
      %p46 = scmp.ne.s32.totalorder %s38, %s41
      %p47 = scmp.eq.s32.totalorder %s14, 0
      %p48 = por %p46, %p47
      %p49 = scmp.ne.s32.totalorder %s38, %s41
      %p50 = scmp.eq.s32.totalorder %s19, 3
      %p51 = por %p49, %p50
      %p52 = scmp.ne.s32.totalorder %s41, %s42
      %p53 = scmp.eq.s32.totalorder %s19, 0
      %p54 = por %p52, %p53
      %p55 = scmp.ne.s32.totalorder %s41, %s42
      %p56 = scmp.eq.s32.totalorder %s20, 3
      %p57 = por %p55, %p56
      %p59 = scmp.ne.s32.totalorder %s42, %s58
      %p60 = scmp.eq.s32.totalorder %s20, 0
      %p61 = por %p59, %p60
      %s62 = ssub.s32 %s21, %s33
      %p63 = scmp.eq.s32.totalorder %s62, 0
      %s65 = sadd.s32 %s64, 1
      %s66 = scalar_select %p63, %s64, %s65
      %p69 = pneg %p63
      %p70 = scmp.eq.s32.totalorder %s14, 3
      %p71 = por %p69, %p70
      %p72 = scmp.ne.s32.totalorder %s64, %s67
      %p73 = scmp.eq.s32.totalorder %s14, 0
      %p74 = por %p72, %p73
      %p75 = scmp.ne.s32.totalorder %s64, %s67
      %p76 = scmp.eq.s32.totalorder %s19, 3
      %p77 = por %p75, %p76
      %p78 = scmp.ne.s32.totalorder %s67, %s68
      %p79 = scmp.eq.s32.totalorder %s19, 0
      %p80 = por %p78, %p79
      %p81 = scmp.ne.s32.totalorder %s67, %s68
      %p82 = scmp.eq.s32.totalorder %s20, 3
      %p83 = por %p81, %p82
      %p85 = scmp.ne.s32.totalorder %s68, %s84
      %p86 = scmp.eq.s32.totalorder %s20, 0
      %p87 = por %p85, %p86
      %s88 = ssub.s32 %s21, %s33
      %p89 = scmp.eq.s32.totalorder %s88, 0
      %s91 = sadd.s32 %s90, 1
      %s92 = scalar_select %p89, %s90, %s91
      %p95 = pneg %p89
      %p96 = scmp.eq.s32.totalorder %s14, 3
      %p97 = por %p95, %p96
      %p98 = scmp.ne.s32.totalorder %s90, %s93
      %p99 = scmp.eq.s32.totalorder %s14, 0
      %p100 = por %p98, %p99
      %p101 = scmp.ne.s32.totalorder %s90, %s93
      %p102 = scmp.eq.s32.totalorder %s19, 3
      %p103 = por %p101, %p102
      %p104 = scmp.ne.s32.totalorder %s93, %s94
      %p105 = scmp.eq.s32.totalorder %s19, 0
      %p106 = por %p104, %p105
      %p107 = scmp.ne.s32.totalorder %s93, %s94
      %p108 = scmp.eq.s32.totalorder %s20, 3
      %p109 = por %p107, %p108
      %p111 = scmp.ne.s32.totalorder %s94, %s110
      %p112 = scmp.eq.s32.totalorder %s20, 0
      %p113 = por %p111, %p112
      %p114 = scmp.le.s32.totalorder 1, %s14
      %p115 = scmp.lt.s32.totalorder %s14, 5
      %p116 = pnand %p114, %p115
      %p117 = pneg %p116
      // Predicated region
      $region9: #{tpu_custom_call.1} parent=5 // pred_check
        _
      $region10: #{tpu_custom_call.1} parent=5 // pred_check_branch
        %119 = sbr.rel (%p116) target = $region12
      $region11: #{tpu_custom_call.1} parent=5 // pred_region
        %s120 = ssub.s32 %s14, 1
      $region12: #{tpu_custom_call.1} parent=5 // pred_fallthru
        _
      %p121 = scmp.lt.s32.totalorder %s14, 4
      // Predicated region
      $region13: #{tpu_custom_call.1} parent=5 // pred_check
        %p122 = pneg %p121
      $region14: #{tpu_custom_call.1} parent=5 // pred_check_branch
        %124 = sbr.rel (%p122) target = $region16
      $region15: #{tpu_custom_call.1} parent=5 // pred_region
        // Predicated region
        $region17: #{tpu_custom_call.1} parent=15 // pred_check
          %p125 = pneg %p48
        $region18: #{tpu_custom_call.1} parent=15 // pred_check_branch
          %127 = sbr.rel (%p125) target = $region20
        $region19: #{tpu_custom_call.1} parent=15 // pred_region
          %s128 = sand.u32 %s38, 1
          %s129 = scalar_lea.sflag [#allocation4], %s128
          %s130 = sand.u32 %s38, 1
          %s131 = smul.addr %s130, 4
          %s132 = scalar_lea.vmem [#allocation3], %s131
          %s134 = ssub.s32 64, 64
          %135 = vsyncadd %s129, %s134
          %s136 = smul.addr %s22, 2
          %s137 = sadd.s32 %s21, %s136
          %s138 = smul.addr %s137, 64
          %s139 = scalar_lea.hbm %s0, %s138
          %s141 = sshll.u32 %s132, 4
          %s142 = int_to_ptr.vmem [resolvable:$true] %s141
          %144 = dma.hbm_to_vmem [thread:$0]  %s139, 64, %s142, %s129
        $region20: #{tpu_custom_call.1} parent=15 // pred_fallthru
          _
        // Predicated region
        $region21: #{tpu_custom_call.1} parent=15 // pred_check
          %p145 = pneg %p74
        $region22: #{tpu_custom_call.1} parent=15 // pred_check_branch
          %147 = sbr.rel (%p145) target = $region24
        $region23: #{tpu_custom_call.1} parent=15 // pred_region
          %s148 = sand.u32 %s64, 1
          %s149 = scalar_lea.sflag [#allocation6], %s148
          %s150 = sand.u32 %s64, 1
          %s151 = smul.addr %s150, 4
          %s152 = scalar_lea.vmem [#allocation5], %s151
          %s154 = ssub.s32 64, 64
          %155 = vsyncadd %s149, %s154
          %s156 = smul.addr %s21, 64
          %s157 = scalar_lea.hbm %s1, %s156
          %s159 = sshll.u32 %s152, 4
          %s160 = int_to_ptr.vmem [resolvable:$true] %s159
          %162 = dma.hbm_to_vmem [thread:$0]  %s157, 64, %s160, %s149
        $region24: #{tpu_custom_call.1} parent=15 // pred_fallthru
          _
      $region16: #{tpu_custom_call.1} parent=5 // pred_fallthru
        _
      %p163 = scmp.le.s32.totalorder 1, %s14
      %p164 = scmp.lt.s32.totalorder %s14, 5
      %p165 = pnand %p163, %p164
      %p166 = pneg %p165
      // Predicated region
      $region25: #{tpu_custom_call.1} parent=5 // pred_check
        _
      $region26: #{tpu_custom_call.1} parent=5 // pred_check_branch
        %168 = sbr.rel (%p165) target = $region28
      $region27: #{tpu_custom_call.1} parent=5 // pred_region
        %s169 = ssub.s32 %s14, 1
        %s170 = sand.u32 %s41, 1
        %s171 = scalar_lea.sflag [#allocation4], %s170
        %s172 = sand.u32 %s41, 1
        %s173 = smul.addr %s172, 4
        %s174 = scalar_lea.vmem [#allocation3], %s173
        // Predicated region
        $region29: #{tpu_custom_call.1} parent=27 // pred_check
          %p175 = pneg %p54
        $region30: #{tpu_custom_call.1} parent=27 // pred_check_branch
          %177 = sbr.rel (%p175) target = $region32
        $region31: #{tpu_custom_call.1} parent=27 // pred_region
          %178 = dma.done %s171, 64
        $region32: #{tpu_custom_call.1} parent=27 // pred_fallthru
          _
        %s179 = sand.u32 %s67, 1
        %s180 = scalar_lea.sflag [#allocation6], %s179
        %s181 = sand.u32 %s67, 1
        %s182 = smul.addr %s181, 4
        %s183 = scalar_lea.vmem [#allocation5], %s182
        // Predicated region
        $region33: #{tpu_custom_call.1} parent=27 // pred_check
          %p184 = pneg %p80
        $region34: #{tpu_custom_call.1} parent=27 // pred_check_branch
          %186 = sbr.rel (%p184) target = $region36
        $region35: #{tpu_custom_call.1} parent=27 // pred_region
          %187 = dma.done %s180, 64
        $region36: #{tpu_custom_call.1} parent=27 // pred_fallthru
          _
        %s188 = sand.u32 %s41, 1
        %s189 = scalar_lea.sflag [#allocation4], %s188
        %s190 = sand.u32 %s41, 1
        %s191 = smul.addr %s190, 4
        %s192 = scalar_lea.vmem [#allocation3], %s191
        %p193 = pneg %p54
        %p194 = pneg %p51
        %s195 = sand.u32 %s67, 1
        %s196 = scalar_lea.sflag [#allocation6], %s195
        %s197 = sand.u32 %s67, 1
        %s198 = smul.addr %s197, 4
        %s199 = scalar_lea.vmem [#allocation5], %s198
        %p200 = pneg %p80
        %p201 = pneg %p77
        %p202 = pneg %p106
        %p203 = pneg %p103
        %p204 = scmp.lt.s32.totalorder %s23, 1
        %s205 = scalar_select %p204, %s23, 1
        %s206 = scalar_lea.vmem %s2, %s205
        %p207 = scmp.lt.s32.totalorder %s23, 1
        %s208 = scalar_select %p207, %s23, 1
        %s209 = scalar_lea.vmem %s2, %s208
        %p210 = scmp.eq.s32.totalorder %s24, 0
        // Predicated region
        $region37: #{tpu_custom_call.1} parent=27 // pred_check
          %p211 = pneg %p210
        $region38: #{tpu_custom_call.1} parent=27 // pred_check_branch
          %213 = sbr.rel (%p211) target = $region40
        $region39: #{tpu_custom_call.1} parent=27 // pred_region
          %vm214 = vcmask 0
          %215 = vst.msk [vmem:[#allocation2] sm:$0x1] %vm214, 0.0
        $region40: #{tpu_custom_call.1} parent=27 // pred_fallthru
          _
        %v216 = vld [vmem:[%s174] sm:$0xf]
        %v217 = vld [vmem:[%s183] sm:$0xf]
        %v218 = vsub.f32 %v216, %v217
        %v219 = vmul.f32 %v218, %v218
        %v220 = vld [vmem:[#allocation2] sm:$0x1]
        %vm221 = vcmask 1043456
        %v222 = vsel %vm221, %v219, 0.0
        %223 = vadd.xlane.f32.xlu0 %v222
        %v224 = vpop.xlane.xlu0 %223
        %v225 = vrot.slane %v224, 4
        %v226 = vadd.f32 %v224, %v225
        %v227 = vrot.slane %v226, 2
        %v228 = vadd.f32 %v226, %v227
        %v229 = vrot.slane %v228, 1
        %v230 = vadd.f32 %v228, %v229
        %s231 = vtos %v230
        %v232 = vstv %s231
        %v233 = vadd.f32 %v220, %v232
        %vm234 = vcmask 0
        %235 = vst.msk [vmem:[#allocation2] sm:$0x1] %vm234, %v233
        %p236 = scmp.eq.s32.totalorder %s24, 1
        // Predicated region
        $region41: #{tpu_custom_call.1} parent=27 // pred_check
          %p237 = pneg %p236
        $region42: #{tpu_custom_call.1} parent=27 // pred_check_branch
          %239 = sbr.rel (%p237) target = $region44
        $region43: #{tpu_custom_call.1} parent=27 // pred_region
          %v240 = vld [vmem:[#allocation2] sm:$0x1]
          %241 = vst.msk [vmem:[%s209] sm:$0x1] %vm234, %v240
        $region44: #{tpu_custom_call.1} parent=27 // pred_fallthru
          _
        %p242 = scmp.lt.s32.totalorder %s23, 1
        %s243 = scalar_select %p242, %s23, 1
        %s244 = scalar_lea.vmem %s2, %s243
        // Predicated region
        $region45: #{tpu_custom_call.1} parent=27 // pred_check
          %p245 = pneg %p103
        $region46: #{tpu_custom_call.1} parent=27 // pred_check_branch
          %247 = sbr.rel (%p245) target = $region48
        $region47: #{tpu_custom_call.1} parent=27 // pred_region
          _
        $region48: #{tpu_custom_call.1} parent=27 // pred_fallthru
          _
      $region28: #{tpu_custom_call.1} parent=5 // pred_fallthru
        _
      %p248 = scmp.le.s32.totalorder 2, %s14
      // Predicated region
      $region49: #{tpu_custom_call.1} parent=5 // pred_check
        %p249 = pneg %p248
      $region50: #{tpu_custom_call.1} parent=5 // pred_check_branch
        %251 = sbr.rel (%p249) target = $region52
      $region51: #{tpu_custom_call.1} parent=5 // pred_region
        %s252 = ssub.s32 %s14, 2
        // Predicated region
        $region53: #{tpu_custom_call.1} parent=51 // pred_check
          %p253 = pneg %p109
        $region54: #{tpu_custom_call.1} parent=51 // pred_check_branch
          %255 = sbr.rel (%p253) target = $region56
        $region55: #{tpu_custom_call.1} parent=51 // pred_region
          %p256 = scmp.lt.s32.totalorder %s25, 1
          %s257 = scalar_select %p256, %s25, 1
          %s258 = scalar_lea.vmem %s2, %s257
        $region56: #{tpu_custom_call.1} parent=51 // pred_fallthru
          _
      $region52: #{tpu_custom_call.1} parent=5 // pred_fallthru
        _
    $region6: #{tpu_custom_call.1} parent=1 // loop_footer
      %s18 = sadd.s32 1, %s14
    $region7: #{tpu_custom_call.1} parent=1 // loop_footer_branch
      %13 = sbr.rel target = $region3
    $region8: #{tpu_custom_call.1} parent=1 // loop_exit
      _
    %259 = vsyncpa [#allocation4], 1
    %s260 = scalar_lea.sflag [#allocation4], 1
    %261 = vsyncpa %s260, 1
    %262 = vsyncpa [#allocation6], 1
    %s263 = scalar_lea.sflag [#allocation6], 1
    %264 = vsyncpa %s263, 1

</llo_original>
